<compile_context>
chip_gen: v5e
topology: v5e:2x2
jax: 0.10.0
libtpu: 0.0.40
codegen_flags: <defaults>
</compile_context>

<pallas_src>
import functools

import jax
import jax.numpy as jnp
from jax.experimental import pallas as pl
from jax.experimental.pallas import tpu as pltpu

LANE = 128
SUBLANE = 8


def _round_up(x: int, m: int) -> int:
    return ((x + m - 1) // m) * m


# ------------------------------- kernel --------------------------------------

def _attention_kernel(x_ref, wuv_ref, buv_ref, *refs,
                      n_gated: int, d_h_p: int, compute_dtype):
    """Fused gated-MLP forward on one batch tile (everything VMEM resident).

    refs = (w_0, b_0, ..., w_{L-1}, b_{L-1}, o_ref); the first L-1 layers are
    activated + gated, the last is a plain linear.
    """
    o_ref = refs[-1]
    wb = refs[:-1]
    f32 = jnp.float32

    x = x_ref[...]

    # Fused U|V branch: one MXU pass with N = 2*d_h_p, f32 accumulation,
    # then split at the lane-tile (128) boundary — a free view.
    uv = jnp.tanh(
        jnp.dot(x, wuv_ref[...], preferred_element_type=f32) + buv_ref[...]
    ).astype(compute_dtype)
    u = uv[:, :d_h_p]
    d = uv[:, d_h_p:] - u          # hoisted (v - u): gate becomes u + h * d

    # Gated hidden layers (statically unrolled; nets here are shallow).
    y = x
    for i in range(n_gated):
        w = wb[2 * i][...]
        b = wb[2 * i + 1][...]
        h = jnp.tanh(
            jnp.dot(y, w, preferred_element_type=f32) + b
        ).astype(compute_dtype)
        y = u + h * d              # 2 VPU element-ops / layer (was 4)

    # Final linear layer, no activation / gate.
    w_last = wb[-2][...]
    b_last = wb[-1][...]
    out = jnp.dot(y, w_last, preferred_element_type=f32) + b_last
    o_ref[...] = out.astype(o_ref.dtype)


# ----------------------------- param packing ---------------------------------

def pack_params(params, compute_dtype=None):
    """Pad / concat / cast the (tiny) weights once, outside the hot path.

    params: {"U": (wu, bu), "V": (wv, bv), "net": [(w_i, b_i), ...]}
            weights in [d_in, d_out] layout (transposed vs torch.nn.Linear),
            biases 1-D.  Last entry of "net" is the output layer.
    compute_dtype: MXU-operand / intermediate dtype. Use jnp.bfloat16 on
            v6e/v7x, jnp.float32 on v5e. Accumulation is always f32.
    Returns (weight_arrays, meta) for attention_forward.
    """
    wu, bu = params["U"]
    wv, bv = params["V"]
    net = params["net"]
    assert len(net) >= 1
    n_gated = len(net) - 1

    d_in, d_h = wu.shape
    d_out = net[-1][0].shape[1]
    for (w, _) in net[:-1]:
        assert w.shape[1] == d_h, "all hidden widths must equal layer_size[1]"
    assert wv.shape == (d_in, d_h)

    if compute_dtype is None:
        compute_dtype = wu.dtype
    compute_dtype = jnp.dtype(compute_dtype)

    d_h_p = _round_up(d_h, LANE)   # lane-dense hidden width (intermediates)

    def pad2(a, rows, cols):
        a = a if a.ndim == 2 else a.reshape(1, -1)
        return jnp.pad(a, ((0, rows - a.shape[0]), (0, cols - a.shape[1])))

    # Fused U|V weight: one dot with N = 2*d_h_p fills the 256-wide MXU.
    wuv = jnp.concatenate(
        [pad2(wu, d_in, d_h_p), pad2(wv, d_in, d_h_p)], axis=1
    ).astype(compute_dtype)
    buv = jnp.concatenate(
        [pad2(bu, 1, d_h_p), pad2(bv, 1, d_h_p)], axis=1
    ).astype(jnp.float32)

    weights = [wuv, buv]
    for li, (w, b) in enumerate(net):
        rows = d_in if li == 0 else d_h_p           # K matches unpadded x
        cols = d_out if li == n_gated else d_h_p    # true d_out on last layer
        weights.append(pad2(w, rows, cols).astype(compute_dtype))
        weights.append(pad2(b, 1, cols).astype(jnp.float32))

    meta = dict(d_in=d_in, d_h=d_h, d_h_p=d_h_p, d_out=d_out,
                n_gated=n_gated, compute_dtype=compute_dtype)
    return weights, meta


# ------------------------------- wrapper --------------------------------------

def _default_vmem_limit():
    """Generation-aware scoped-VMEM limit (None -> compiler default)."""
    try:
        kind = jax.devices()[0].device_kind.lower()
    except Exception:
        return None
    if "v5" in kind or "v6" in kind:
        return 96 << 20        # 128 MiB physical VMEM; leave headroom
    if "v7" in kind:
        return 48 << 20        # 64 MiB physical VMEM on v7x
    return None


def attention_forward(x, packed, *, tm=None, interpret=False):
    """Fused forward pass of the `attention` module.

    x:      [B, d_in] (any float dtype; cast once to meta["compute_dtype"]).
    packed: result of pack_params(params, compute_dtype).
    """
    weights, meta = packed
    B, d_in = x.shape
    assert d_in == meta["d_in"]
    d_out = meta["d_out"]
    d_h_p = meta["d_h_p"]
    n_gated = meta["n_gated"]
    cdtype = meta["compute_dtype"]
    out_dtype = x.dtype

    # Cast MXU operands once in the wrapper (not per dot).
    x_c = x.astype(cdtype)

    # Tiny-batch corner case: keep the batch block <= array rows except when
    # B < 8 (pad just the few missing rows).
    row_pad = 0
    if B < SUBLANE:
        row_pad = SUBLANE - B
        x_c = jnp.pad(x_c, ((0, row_pad), (0, 0)))
    Bk = B + row_pad

    # ---- batch tile choice ---------------------------------------------------
    if tm is None:
        tm = 512
    tm = max(SUBLANE, _round_up(tm, SUBLANE))
    tm = min(tm, (Bk // SUBLANE) * SUBLANE)

    w_bytes = sum(a.size * a.dtype.itemsize for a in weights)

    def tile_bytes(t):
        inter = 5 * t * max(d_h_p, d_in) * 4                      # u,d,h,y live set (f32 bound)
        io = 2 * t * (d_in + d_out) * (jnp.dtype(cdtype).itemsize
                                       + jnp.dtype(out_dtype).itemsize)
        return inter + io

    budget = 24 << 20   # conservative working-set cap (safe on v7x's 64 MiB)
    while tm > SUBLANE and tile_bytes(tm) + w_bytes > budget:
        tm = max(SUBLANE, (tm // 2 // SUBLANE) * SUBLANE)

    n_tiles = pl.cdiv(Bk, tm)

    # ---- specs: x / out tiled over batch (no feature padding), weights
    # whole-array VMEM resident (single-buffered, never re-DMA'd) ---------------
    x_spec = pl.BlockSpec((tm, d_in), lambda i: (i, 0))
    w_specs = [pl.BlockSpec(memory_space=pltpu.MemorySpace.VMEM) for _ in weights]
    out_spec = pl.BlockSpec((tm, d_out), lambda i: (i, 0))

    # ---- advisory cost estimate -----------------------------------------------
    flops = 2 * B * d_in * (2 * d_h_p)                      # fused U|V branch
    for li in range(n_gated + 1):
        rows = d_in if li == 0 else d_h_p
        cols = d_out if li == n_gated else d_h_p
        flops += 2 * B * rows * cols
    transcendentals = B * d_h_p * (2 + n_gated)
    bytes_accessed = (B * d_in * jnp.dtype(cdtype).itemsize
                      + w_bytes
                      + B * d_out * jnp.dtype(out_dtype).itemsize)

    kernel = functools.partial(_attention_kernel, n_gated=n_gated,
                               d_h_p=d_h_p, compute_dtype=cdtype)

    out = pl.pallas_call(
        kernel,
        out_shape=jax.ShapeDtypeStruct((Bk, d_out), out_dtype),
        grid=(n_tiles,),
        in_specs=[x_spec] + w_specs,
        out_specs=out_spec,
        compiler_params=pltpu.CompilerParams(
            dimension_semantics=("parallel",),      # shard batch tiles across TCs (v7x)
            vmem_limit_bytes=_default_vmem_limit(),
        ),
        cost_estimate=pl.CostEstimate(
            flops=int(flops),
            transcendentals=int(transcendentals),
            bytes_accessed=int(bytes_accessed),
        ),
        interpret=interpret,
    )(x_c, *weights)

    return out[:B] if row_pad else out


# ----------------------------- reference & init -------------------------------

def reference_forward(x, params):
    """Plain-JAX reference (same math as the torch module, eval mode)."""
    hp = jax.lax.Precision.HIGHEST
    wu, bu = params["U"]
    wv, bv = params["V"]
    net = params["net"]
    u = jnp.tanh(jnp.dot(x, wu, precision=hp) + bu)
    v = jnp.tanh(jnp.dot(x, wv, precision=hp) + bv)
    y = x
    for (w, b) in net[:-1]:
        h = jnp.tanh(jnp.dot(y, w, precision=hp) + b)
        y = (1.0 - h) * u + h * v
    w, b = net[-1]
    return jnp.dot(y, w, precision=hp) + b


def glorot_normal(key, d_in, d_out, dtype):
    std = (2.0 / (d_in + d_out)) ** 0.5
    return std * jax.random.normal(key, (d_in, d_out), dtype)


def init_params(key, layer_size, dtype=jnp.float32):
    """Glorot-normal weights, zero biases (matches _init_weights)."""
    d_in, d_h = layer_size[0], layer_size[1]
    key, ku, kv = jax.random.split(key, 3)
    params = {
        "U": (glorot_normal(ku, d_in, d_h, dtype), jnp.zeros((d_h,), dtype)),
        "V": (glorot_normal(kv, d_in, d_h, dtype), jnp.zeros((d_h,), dtype)),
        "net": [],
    }
    for k in range(len(layer_size) - 2):
        key, sub = jax.random.split(key)
        params["net"].append(
            (glorot_normal(sub, layer_size[k], layer_size[k + 1], dtype),
             jnp.zeros((layer_size[k + 1],), dtype))
        )
    key, sub = jax.random.split(key)
    params["net"].append(
        (glorot_normal(sub, layer_size[-2], layer_size[-1], dtype),
         jnp.zeros((layer_size[-1],), dtype))
    )
    return params


if __name__ == "__main__":
    # Small shapes consistent with the module: x in [B, d_in],
    # layer_size = [d_in, H, H, H, d_out] (all hidden widths equal, as the
    # gate (1-y)*u + y*v requires).
    layer_size = [16, 32, 32, 32, 8]
    B = 20  # deliberately not a multiple of 8: exercises the partial last tile

    key = jax.random.PRNGKey(0)
    key, kx = jax.random.split(key)
    x = jax.random.normal(kx, (B, layer_size[0]), jnp.float32)
    params = init_params(key, layer_size)
    y_ref = reference_forward(x, params)

    # f32 operands (v5e-style path) — strict correctness check.
    packed_f32 = pack_params(params, compute_dtype=jnp.float32)
    y = attention_forward(x, packed_f32)
    jax.block_until_ready(y)
    assert y.shape == (B, layer_size[-1])
    err = float(jnp.max(jnp.abs(y - y_ref)))
    assert jnp.allclose(y, y_ref, atol=2e-5, rtol=2e-5), err

    # bf16 operands / intermediates (preferred on v6e / v7x; f32 accumulation)
    # — loose sanity check against the f32 reference.
    packed_bf16 = pack_params(params, compute_dtype=jnp.bfloat16)
    y_bf = attention_forward(x, packed_bf16)
    jax.block_until_ready(y_bf)
    err_bf = float(jnp.max(jnp.abs(y_bf.astype(jnp.float32) - y_ref)))
    assert err_bf < 1e-1, err_bf

    # TODO(synk): dropout / BatchNorm / LayerNorm build variants and
    # input_transform / output_transform hooks are not exercised here
    # (standard build, eval mode, dropout_rate=0).
    print("KERNEL_OK")
</pallas_src>

<mosaic_0001>
module attributes {stable_mosaic.version = 11 : i64} {
  func.func @_attention_kernel(%arg0: i32, %arg1: memref<16x16xf32, #tpu.memory_space<vmem>>, %arg2: memref<16x256xf32, #tpu.memory_space<vmem>>, %arg3: memref<1x256xf32, #tpu.memory_space<vmem>>, %arg4: memref<16x128xf32, #tpu.memory_space<vmem>>, %arg5: memref<1x128xf32, #tpu.memory_space<vmem>>, %arg6: memref<128x128xf32, #tpu.memory_space<vmem>>, %arg7: memref<1x128xf32, #tpu.memory_space<vmem>>, %arg8: memref<128x128xf32, #tpu.memory_space<vmem>>, %arg9: memref<1x128xf32, #tpu.memory_space<vmem>>, %arg10: memref<128x8xf32, #tpu.memory_space<vmem>>, %arg11: memref<1x8xf32, #tpu.memory_space<vmem>>, %arg12: memref<16x8xf32, #tpu.memory_space<vmem>>) attributes {dimension_semantics = [#tpu.dimension_semantics<parallel>], iteration_bounds = array<i64: 2>, scalar_prefetch = 0 : i64, scratch_operands = 0 : i64, tpu.core_type = #tpu.core_type<tc>, window_params = [{transform_indices = @transform_0, window_bounds = array<i64: 16, 16>}, {pipeline_mode = #tpu.pipeline_mode<synchronous>, transform_indices = @transform_1, window_bounds = array<i64: 16, 256>}, {pipeline_mode = #tpu.pipeline_mode<synchronous>, transform_indices = @transform_2, window_bounds = array<i64: 1, 256>}, {pipeline_mode = #tpu.pipeline_mode<synchronous>, transform_indices = @transform_3, window_bounds = array<i64: 16, 128>}, {pipeline_mode = #tpu.pipeline_mode<synchronous>, transform_indices = @transform_4, window_bounds = array<i64: 1, 128>}, {pipeline_mode = #tpu.pipeline_mode<synchronous>, transform_indices = @transform_5, window_bounds = array<i64: 128, 128>}, {pipeline_mode = #tpu.pipeline_mode<synchronous>, transform_indices = @transform_6, window_bounds = array<i64: 1, 128>}, {pipeline_mode = #tpu.pipeline_mode<synchronous>, transform_indices = @transform_7, window_bounds = array<i64: 128, 128>}, {pipeline_mode = #tpu.pipeline_mode<synchronous>, transform_indices = @transform_8, window_bounds = array<i64: 1, 128>}, {pipeline_mode = #tpu.pipeline_mode<synchronous>, transform_indices = @transform_9, window_bounds = array<i64: 128, 8>}, {pipeline_mode = #tpu.pipeline_mode<synchronous>, transform_indices = @transform_10, window_bounds = array<i64: 1, 8>}, {transform_indices = @transform_11, window_bounds = array<i64: 16, 8>}]} {
    %c0 = arith.constant 0 : index
    %c0_0 = arith.constant 0 : index
    %0 = vector.load %arg1[%c0, %c0_0] : memref<16x16xf32, #tpu.memory_space<vmem>>, vector<16x16xf32>
    %c0_1 = arith.constant 0 : index
    %c0_2 = arith.constant 0 : index
    %1 = vector.load %arg2[%c0_1, %c0_2] : memref<16x256xf32, #tpu.memory_space<vmem>>, vector<16x256xf32>
    %cst = arith.constant dense<0.000000e+00> : vector<16x256xf32>
    %2 = tpu.matmul %0, %1, %cst {dimension_numbers = #tpu.dot_dimension_numbers<[1], [0], [0], [1], [0, 0, 1, 1], [], []>} : vector<16x16xf32>, vector<16x256xf32>, vector<16x256xf32> -> vector<16x256xf32>
    %c0_3 = arith.constant 0 : index
    %c0_4 = arith.constant 0 : index
    %3 = vector.load %arg3[%c0_3, %c0_4] : memref<1x256xf32, #tpu.memory_space<vmem>>, vector<1x256xf32>
    %4 = vector.broadcast %3 : vector<1x256xf32> to vector<16x256xf32>
    %5 = arith.addf %2, %4 : vector<16x256xf32>
    %6 = math.tanh %5 : vector<16x256xf32>
    %7 = vector.extract_strided_slice %6 {offsets = [0, 0], sizes = [16, 128], strides = [1, 1]} : vector<16x256xf32> to vector<16x128xf32>
    %8 = vector.extract_strided_slice %6 {offsets = [0, 128], sizes = [16, 128], strides = [1, 1]} : vector<16x256xf32> to vector<16x128xf32>
    %9 = arith.subf %8, %7 : vector<16x128xf32>
    %c0_5 = arith.constant 0 : index
    %c0_6 = arith.constant 0 : index
    %10 = vector.load %arg4[%c0_5, %c0_6] : memref<16x128xf32, #tpu.memory_space<vmem>>, vector<16x128xf32>
    %c0_7 = arith.constant 0 : index
    %c0_8 = arith.constant 0 : index
    %11 = vector.load %arg5[%c0_7, %c0_8] : memref<1x128xf32, #tpu.memory_space<vmem>>, vector<1x128xf32>
    %cst_9 = arith.constant dense<0.000000e+00> : vector<16x128xf32>
    %12 = tpu.matmul %0, %10, %cst_9 {dimension_numbers = #tpu.dot_dimension_numbers<[1], [0], [0], [1], [0, 0, 1, 1], [], []>} : vector<16x16xf32>, vector<16x128xf32>, vector<16x128xf32> -> vector<16x128xf32>
    %13 = vector.broadcast %11 : vector<1x128xf32> to vector<16x128xf32>
    %14 = arith.addf %12, %13 : vector<16x128xf32>
    %15 = math.tanh %14 : vector<16x128xf32>
    %16 = arith.mulf %15, %9 : vector<16x128xf32>
    %17 = arith.addf %7, %16 : vector<16x128xf32>
    %c0_10 = arith.constant 0 : index
    %c0_11 = arith.constant 0 : index
    %18 = vector.load %arg6[%c0_10, %c0_11] : memref<128x128xf32, #tpu.memory_space<vmem>>, vector<128x128xf32>
    %c0_12 = arith.constant 0 : index
    %c0_13 = arith.constant 0 : index
    %19 = vector.load %arg7[%c0_12, %c0_13] : memref<1x128xf32, #tpu.memory_space<vmem>>, vector<1x128xf32>
    %cst_14 = arith.constant dense<0.000000e+00> : vector<16x128xf32>
    %20 = tpu.matmul %17, %18, %cst_14 {dimension_numbers = #tpu.dot_dimension_numbers<[1], [0], [0], [1], [0, 0, 1, 1], [], []>} : vector<16x128xf32>, vector<128x128xf32>, vector<16x128xf32> -> vector<16x128xf32>
    %21 = vector.broadcast %19 : vector<1x128xf32> to vector<16x128xf32>
    %22 = arith.addf %20, %21 : vector<16x128xf32>
    %23 = math.tanh %22 : vector<16x128xf32>
    %24 = arith.mulf %23, %9 : vector<16x128xf32>
    %25 = arith.addf %7, %24 : vector<16x128xf32>
    %c0_15 = arith.constant 0 : index
    %c0_16 = arith.constant 0 : index
    %26 = vector.load %arg8[%c0_15, %c0_16] : memref<128x128xf32, #tpu.memory_space<vmem>>, vector<128x128xf32>
    %c0_17 = arith.constant 0 : index
    %c0_18 = arith.constant 0 : index
    %27 = vector.load %arg9[%c0_17, %c0_18] : memref<1x128xf32, #tpu.memory_space<vmem>>, vector<1x128xf32>
    %cst_19 = arith.constant dense<0.000000e+00> : vector<16x128xf32>
    %28 = tpu.matmul %25, %26, %cst_19 {dimension_numbers = #tpu.dot_dimension_numbers<[1], [0], [0], [1], [0, 0, 1, 1], [], []>} : vector<16x128xf32>, vector<128x128xf32>, vector<16x128xf32> -> vector<16x128xf32>
    %29 = vector.broadcast %27 : vector<1x128xf32> to vector<16x128xf32>
    %30 = arith.addf %28, %29 : vector<16x128xf32>
    %31 = math.tanh %30 : vector<16x128xf32>
    %32 = arith.mulf %31, %9 : vector<16x128xf32>
    %33 = arith.addf %7, %32 : vector<16x128xf32>
    %c0_20 = arith.constant 0 : index
    %c0_21 = arith.constant 0 : index
    %34 = vector.load %arg10[%c0_20, %c0_21] : memref<128x8xf32, #tpu.memory_space<vmem>>, vector<128x8xf32>
    %c0_22 = arith.constant 0 : index
    %c0_23 = arith.constant 0 : index
    %35 = vector.load %arg11[%c0_22, %c0_23] : memref<1x8xf32, #tpu.memory_space<vmem>>, vector<1x8xf32>
    %cst_24 = arith.constant dense<0.000000e+00> : vector<16x8xf32>
    %36 = tpu.matmul %33, %34, %cst_24 {dimension_numbers = #tpu.dot_dimension_numbers<[1], [0], [0], [1], [0, 0, 1, 1], [], []>} : vector<16x128xf32>, vector<128x8xf32>, vector<16x8xf32> -> vector<16x8xf32>
    %37 = vector.broadcast %35 : vector<1x8xf32> to vector<16x8xf32>
    %38 = arith.addf %36, %37 : vector<16x8xf32>
    %c0_25 = arith.constant 0 : index
    %c0_26 = arith.constant 0 : index
    %39 = vector.load %arg12[%c0_25, %c0_26] : memref<16x8xf32, #tpu.memory_space<vmem>>, vector<16x8xf32>
    tpu.vector_store %arg12[%c0_25, %c0_26], %38 {strides = array<i32>} : memref<16x8xf32, #tpu.memory_space<vmem>>, vector<16x8xf32>,
    return
  }
  func.func @transform_0(%arg0: i32) -> (i32, i32) {
    %c0_i32 = arith.constant 0 : i32
    %c0_i32_0 = arith.constant 0 : i32
    return %arg0, %c0_i32 : i32, i32
  }
  func.func @transform_1(%arg0: i32) -> (i32, i32) {
    %c0_i32 = arith.constant 0 : i32
    %c0_i32_0 = arith.constant 0 : i32
    %c0_i32_1 = arith.constant 0 : i32
    return %c0_i32, %c0_i32_0 : i32, i32
  }
  func.func @transform_2(%arg0: i32) -> (i32, i32) {
    %c0_i32 = arith.constant 0 : i32
    %c0_i32_0 = arith.constant 0 : i32
    %c0_i32_1 = arith.constant 0 : i32
    return %c0_i32, %c0_i32_0 : i32, i32
  }
  func.func @transform_3(%arg0: i32) -> (i32, i32) {
    %c0_i32 = arith.constant 0 : i32
    %c0_i32_0 = arith.constant 0 : i32
    %c0_i32_1 = arith.constant 0 : i32
    return %c0_i32, %c0_i32_0 : i32, i32
  }
  func.func @transform_4(%arg0: i32) -> (i32, i32) {
    %c0_i32 = arith.constant 0 : i32
    %c0_i32_0 = arith.constant 0 : i32
    %c0_i32_1 = arith.constant 0 : i32
    return %c0_i32, %c0_i32_0 : i32, i32
  }
  func.func @transform_5(%arg0: i32) -> (i32, i32) {
    %c0_i32 = arith.constant 0 : i32
    %c0_i32_0 = arith.constant 0 : i32
    %c0_i32_1 = arith.constant 0 : i32
    return %c0_i32, %c0_i32_0 : i32, i32
  }
  func.func @transform_6(%arg0: i32) -> (i32, i32) {
    %c0_i32 = arith.constant 0 : i32
    %c0_i32_0 = arith.constant 0 : i32
    %c0_i32_1 = arith.constant 0 : i32
    return %c0_i32, %c0_i32_0 : i32, i32
  }
  func.func @transform_7(%arg0: i32) -> (i32, i32) {
    %c0_i32 = arith.constant 0 : i32
    %c0_i32_0 = arith.constant 0 : i32
    %c0_i32_1 = arith.constant 0 : i32
    return %c0_i32, %c0_i32_0 : i32, i32
  }
  func.func @transform_8(%arg0: i32) -> (i32, i32) {
    %c0_i32 = arith.constant 0 : i32
    %c0_i32_0 = arith.constant 0 : i32
    %c0_i32_1 = arith.constant 0 : i32
    return %c0_i32, %c0_i32_0 : i32, i32
  }
  func.func @transform_9(%arg0: i32) -> (i32, i32) {
    %c0_i32 = arith.constant 0 : i32
    %c0_i32_0 = arith.constant 0 : i32
    %c0_i32_1 = arith.constant 0 : i32
    return %c0_i32, %c0_i32_0 : i32, i32
  }
  func.func @transform_10(%arg0: i32) -> (i32, i32) {
    %c0_i32 = arith.constant 0 : i32
    %c0_i32_0 = arith.constant 0 : i32
    %c0_i32_1 = arith.constant 0 : i32
    return %c0_i32, %c0_i32_0 : i32, i32
  }
  func.func @transform_11(%arg0: i32) -> (i32, i32) {
    %c0_i32 = arith.constant 0 : i32
    %c0_i32_0 = arith.constant 0 : i32
    return %arg0, %c0_i32 : i32, i32
  }
}

</mosaic_0001>

<llo_original>
// kernel: tpu_custom_call.1
$region0: #{tpu_custom_call.1}
  #allocation0 [shape = 'u32[]', space=smem, size = 0x4, offset = 0x4, fixed_abs, tag = 'smem constant byte address 0x4 - core index']
  #allocation1 [shape = 'u32[72,128]{1,0:T(1,128)}', space=vmem, size = 0x9000, scoped, tag = 'internal scratch']
  %s0 = inlined_call_operand.vmem [shape: f32[20,16], index: 0, kind: input, shape index: {}]
  %s1 = inlined_call_operand.vmem [shape: f32[16,256], index: 1, kind: input, shape index: {}]
  %s2 = inlined_call_operand.hbm [shape: f32[1,256], index: 2, kind: input, shape index: {}]
  %s3 = inlined_call_operand.vmem [shape: f32[16,128], index: 3, kind: input, shape index: {}]
  %s4 = inlined_call_operand.hbm [shape: f32[1,128], index: 4, kind: input, shape index: {}]
  %s5 = inlined_call_operand.vmem [shape: f32[128,128], index: 5, kind: input, shape index: {}]
  %s6 = inlined_call_operand.hbm [shape: f32[1,128], index: 6, kind: input, shape index: {}]
  %s7 = inlined_call_operand.hbm [shape: f32[128,128], index: 7, kind: input, shape index: {}]
  %s8 = inlined_call_operand.hbm [shape: f32[1,128], index: 8, kind: input, shape index: {}]
  %s9 = inlined_call_operand.vmem [shape: f32[128,8], index: 9, kind: input, shape index: {}]
  %s10 = inlined_call_operand.vmem [shape: f32[1,8], index: 10, kind: input, shape index: {}]
  %s11 = inlined_call_operand.vmem [shape: f32[20,8], index: 11, kind: output, shape index: {}]
  %s12 = sld [smem:[#allocation0]]
  $region145: #{tpu_custom_call.1} parent=0
    _
  %s14 = ssub.s32 1, %s12
  %s15 = scalar_select 0, %s14, %s12
  $region1: #{tpu_custom_call.1} parent=0
    #allocation2 [shape = 'u8[1024]{0}', space=vmem, size = 0x400, scoped, tag = 'input window, operand 2, single buffered']
    #allocation3 [shape = 's32[2]{0}', space=sflag, size = 0x8, scoped, tag = 'scoped memory for tpu_custom_call.1']
    #allocation4 [shape = 'u8[512]{0}', space=vmem, size = 0x400, scoped, tag = 'input window, operand 4, single buffered']
    #allocation5 [shape = 's32[1]{0}', space=sflag, size = 0x4, scoped, tag = 'scoped memory for tpu_custom_call.1']
    #allocation6 [shape = 'u8[512]{0}', space=vmem, size = 0x400, scoped, tag = 'input window, operand 6, single buffered']
    #allocation7 [shape = 'u8[65536]{0}', space=vmem, size = 0x10000, scoped, tag = 'input window, operand 7, single buffered']
    #allocation8 [shape = 's32[1]{0}', space=sflag, size = 0x4, scoped, tag = 'scoped memory for tpu_custom_call.1']
    #allocation9 [shape = 'u8[512]{0}', space=vmem, size = 0x400, scoped, tag = 'input window, operand 8, single buffered']
    #allocation10 [shape = 'u8[16384]{0}', space=vmem, size = 0x4000, scoped, tag = 'output window, operand 0']
    %16 = vsyncpa [#allocation3], 0
    %17 = vsyncpa [#allocation5], 0
    %18 = vsyncpa [#allocation8], 0
    loop: start=0, step=1, limit=4
    $region2: #{tpu_custom_call.1} parent=1 // loop_pre_header
      _
    $region3: #{tpu_custom_call.1} parent=1 // loop_header
      %s20 = sphi 0, %s24
      %p21 = scmp.ge.s32.totalorder %s20, 4
      %s30 = sphi 0, %s32
      %s33 = sphi 0, %s30
      %s34 = sphi 0, %s33
      %s50 = sphi 0, %s34
      %s54 = sphi 0, %s54
      %s56 = sphi 0, %s54
      %s57 = sphi 0, %s56
      %s71 = sphi 0, %s57
      %s75 = sphi 0, %s75
      %s77 = sphi 0, %s75
      %s78 = sphi 0, %s77
      %s92 = sphi 0, %s78
      %s96 = sphi 0, %s96
      %s98 = sphi 0, %s96
      %s99 = sphi 0, %s98
      %s113 = sphi 0, %s99
      %s117 = sphi 0, %s117
      %s119 = sphi 0, %s117
      %s120 = sphi 0, %s119
      %s134 = sphi 0, %s120
      %s138 = sphi 0, %s138
      %s140 = sphi 0, %s138
      %s141 = sphi 0, %s140
      %s155 = sphi 0, %s141
      %s159 = sphi 0, %s159
      %s161 = sphi 0, %s159
      %s162 = sphi 0, %s161
      %s176 = sphi 0, %s162
      %s180 = sphi 0, %s180
      %s182 = sphi 0, %s180
      %s183 = sphi 0, %s182
      %s197 = sphi 0, %s183
      %s201 = sphi 0, %s201
      %s203 = sphi 0, %s201
      %s204 = sphi 0, %s203
      %s218 = sphi 0, %s204
      %s222 = sphi 0, %s222
      %s224 = sphi 0, %s222
      %s225 = sphi 0, %s224
      %s239 = sphi 0, %s225
      %s243 = sphi 0, %s243
      %s245 = sphi 0, %s243
      %s246 = sphi 0, %s245
      %s260 = sphi 0, %s246
      %s266 = sphi 0, %s268
      %s269 = sphi 0, %s266
      %s270 = sphi 0, %s269
      %s286 = sphi 0, %s270
    $region4: #{tpu_custom_call.1} parent=1 // loop_header_branch
      %23 = sbr.rel (%p21) target = $region8
    $region5: #{tpu_custom_call.1} parent=1 // loop_body
      %s25 = ssub.s32 %s20, 1
      %s26 = ssub.s32 %s20, 2
      %s27 = sadd.s32 %s20, 1
      %s28 = ssub.s32 %s20, %s27
      %p29 = scmp.eq.s32.totalorder %s28, 0
      %s31 = sadd.s32 %s30, 1
      %s32 = scalar_select %p29, %s30, %s31
      %p35 = pneg %p29
      %p36 = scmp.eq.s32.totalorder %s20, 1
      %p37 = por %p35, %p36
      %p38 = scmp.ne.s32.totalorder %s30, %s33
      %p39 = scmp.eq.s32.totalorder %s20, 0
      %p40 = por %p38, %p39
      %p41 = scmp.ne.s32.totalorder %s30, %s33
      %p42 = scmp.eq.s32.totalorder %s25, 1
      %p43 = por %p41, %p42
      %p44 = scmp.ne.s32.totalorder %s33, %s34
      %p45 = scmp.eq.s32.totalorder %s25, 0
      %p46 = por %p44, %p45
      %p47 = scmp.ne.s32.totalorder %s33, %s34
      %p48 = scmp.eq.s32.totalorder %s26, 1
      %p49 = por %p47, %p48
      %p51 = scmp.ne.s32.totalorder %s34, %s50
      %p52 = scmp.eq.s32.totalorder %s26, 0
      %p53 = por %p51, %p52
      %s55 = sadd.s32 %s54, 1
      %p58 = scmp.eq.s32.totalorder %s20, 1
      %p59 = scmp.ne.s32.totalorder %s54, %s56
      %p60 = scmp.eq.s32.totalorder %s20, 0
      %p61 = por %p59, %p60
      %p62 = scmp.ne.s32.totalorder %s54, %s56
      %p63 = scmp.eq.s32.totalorder %s25, 1
      %p64 = por %p62, %p63
      %p65 = scmp.ne.s32.totalorder %s56, %s57
      %p66 = scmp.eq.s32.totalorder %s25, 0
      %p67 = por %p65, %p66
      %p68 = scmp.ne.s32.totalorder %s56, %s57
      %p69 = scmp.eq.s32.totalorder %s26, 1
      %p70 = por %p68, %p69
      %p72 = scmp.ne.s32.totalorder %s57, %s71
      %p73 = scmp.eq.s32.totalorder %s26, 0
      %p74 = por %p72, %p73
      %s76 = sadd.s32 %s75, 1
      %p79 = scmp.eq.s32.totalorder %s20, 1
      %p80 = scmp.ne.s32.totalorder %s75, %s77
      %p81 = scmp.eq.s32.totalorder %s20, 0
      %p82 = por %p80, %p81
      %p83 = scmp.ne.s32.totalorder %s75, %s77
      %p84 = scmp.eq.s32.totalorder %s25, 1
      %p85 = por %p83, %p84
      %p86 = scmp.ne.s32.totalorder %s77, %s78
      %p87 = scmp.eq.s32.totalorder %s25, 0
      %p88 = por %p86, %p87
      %p89 = scmp.ne.s32.totalorder %s77, %s78
      %p90 = scmp.eq.s32.totalorder %s26, 1
      %p91 = por %p89, %p90
      %p93 = scmp.ne.s32.totalorder %s78, %s92
      %p94 = scmp.eq.s32.totalorder %s26, 0
      %p95 = por %p93, %p94
      %s97 = sadd.s32 %s96, 1
      %p100 = scmp.eq.s32.totalorder %s20, 1
      %p101 = scmp.ne.s32.totalorder %s96, %s98
      %p102 = scmp.eq.s32.totalorder %s20, 0
      %p103 = por %p101, %p102
      %p104 = scmp.ne.s32.totalorder %s96, %s98
      %p105 = scmp.eq.s32.totalorder %s25, 1
      %p106 = por %p104, %p105
      %p107 = scmp.ne.s32.totalorder %s98, %s99
      %p108 = scmp.eq.s32.totalorder %s25, 0
      %p109 = por %p107, %p108
      %p110 = scmp.ne.s32.totalorder %s98, %s99
      %p111 = scmp.eq.s32.totalorder %s26, 1
      %p112 = por %p110, %p111
      %p114 = scmp.ne.s32.totalorder %s99, %s113
      %p115 = scmp.eq.s32.totalorder %s26, 0
      %p116 = por %p114, %p115
      %s118 = sadd.s32 %s117, 1
      %p121 = scmp.eq.s32.totalorder %s20, 1
      %p122 = scmp.ne.s32.totalorder %s117, %s119
      %p123 = scmp.eq.s32.totalorder %s20, 0
      %p124 = por %p122, %p123
      %p125 = scmp.ne.s32.totalorder %s117, %s119
      %p126 = scmp.eq.s32.totalorder %s25, 1
      %p127 = por %p125, %p126
      %p128 = scmp.ne.s32.totalorder %s119, %s120
      %p129 = scmp.eq.s32.totalorder %s25, 0
      %p130 = por %p128, %p129
      %p131 = scmp.ne.s32.totalorder %s119, %s120
      %p132 = scmp.eq.s32.totalorder %s26, 1
      %p133 = por %p131, %p132
      %p135 = scmp.ne.s32.totalorder %s120, %s134
      %p136 = scmp.eq.s32.totalorder %s26, 0
      %p137 = por %p135, %p136
      %s139 = sadd.s32 %s138, 1
      %p142 = scmp.eq.s32.totalorder %s20, 1
      %p143 = scmp.ne.s32.totalorder %s138, %s140
      %p144 = scmp.eq.s32.totalorder %s20, 0
      %p145 = por %p143, %p144
      %p146 = scmp.ne.s32.totalorder %s138, %s140
      %p147 = scmp.eq.s32.totalorder %s25, 1
      %p148 = por %p146, %p147
      %p149 = scmp.ne.s32.totalorder %s140, %s141
      %p150 = scmp.eq.s32.totalorder %s25, 0
      %p151 = por %p149, %p150
      %p152 = scmp.ne.s32.totalorder %s140, %s141
      %p153 = scmp.eq.s32.totalorder %s26, 1
      %p154 = por %p152, %p153
      %p156 = scmp.ne.s32.totalorder %s141, %s155
      %p157 = scmp.eq.s32.totalorder %s26, 0
      %p158 = por %p156, %p157
      %s160 = sadd.s32 %s159, 1
      %p163 = scmp.eq.s32.totalorder %s20, 1
      %p164 = scmp.ne.s32.totalorder %s159, %s161
      %p165 = scmp.eq.s32.totalorder %s20, 0
      %p166 = por %p164, %p165
      %p167 = scmp.ne.s32.totalorder %s159, %s161
      %p168 = scmp.eq.s32.totalorder %s25, 1
      %p169 = por %p167, %p168
      %p170 = scmp.ne.s32.totalorder %s161, %s162
      %p171 = scmp.eq.s32.totalorder %s25, 0
      %p172 = por %p170, %p171
      %p173 = scmp.ne.s32.totalorder %s161, %s162
      %p174 = scmp.eq.s32.totalorder %s26, 1
      %p175 = por %p173, %p174
      %p177 = scmp.ne.s32.totalorder %s162, %s176
      %p178 = scmp.eq.s32.totalorder %s26, 0
      %p179 = por %p177, %p178
      %s181 = sadd.s32 %s180, 1
      %p184 = scmp.eq.s32.totalorder %s20, 1
      %p185 = scmp.ne.s32.totalorder %s180, %s182
      %p186 = scmp.eq.s32.totalorder %s20, 0
      %p187 = por %p185, %p186
      %p188 = scmp.ne.s32.totalorder %s180, %s182
      %p189 = scmp.eq.s32.totalorder %s25, 1
      %p190 = por %p188, %p189
      %p191 = scmp.ne.s32.totalorder %s182, %s183
      %p192 = scmp.eq.s32.totalorder %s25, 0
      %p193 = por %p191, %p192
      %p194 = scmp.ne.s32.totalorder %s182, %s183
      %p195 = scmp.eq.s32.totalorder %s26, 1
      %p196 = por %p194, %p195
      %p198 = scmp.ne.s32.totalorder %s183, %s197
      %p199 = scmp.eq.s32.totalorder %s26, 0
      %p200 = por %p198, %p199
      %s202 = sadd.s32 %s201, 1
      %p205 = scmp.eq.s32.totalorder %s20, 1
      %p206 = scmp.ne.s32.totalorder %s201, %s203
      %p207 = scmp.eq.s32.totalorder %s20, 0
      %p208 = por %p206, %p207
      %p209 = scmp.ne.s32.totalorder %s201, %s203
      %p210 = scmp.eq.s32.totalorder %s25, 1
      %p211 = por %p209, %p210
      %p212 = scmp.ne.s32.totalorder %s203, %s204
      %p213 = scmp.eq.s32.totalorder %s25, 0
      %p214 = por %p212, %p213
      %p215 = scmp.ne.s32.totalorder %s203, %s204
      %p216 = scmp.eq.s32.totalorder %s26, 1
      %p217 = por %p215, %p216
      %p219 = scmp.ne.s32.totalorder %s204, %s218
      %p220 = scmp.eq.s32.totalorder %s26, 0
      %p221 = por %p219, %p220
      %s223 = sadd.s32 %s222, 1
      %p226 = scmp.eq.s32.totalorder %s20, 1
      %p227 = scmp.ne.s32.totalorder %s222, %s224
      %p228 = scmp.eq.s32.totalorder %s20, 0
      %p229 = por %p227, %p228
      %p230 = scmp.ne.s32.totalorder %s222, %s224
      %p231 = scmp.eq.s32.totalorder %s25, 1
      %p232 = por %p230, %p231
      %p233 = scmp.ne.s32.totalorder %s224, %s225
      %p234 = scmp.eq.s32.totalorder %s25, 0
      %p235 = por %p233, %p234
      %p236 = scmp.ne.s32.totalorder %s224, %s225
      %p237 = scmp.eq.s32.totalorder %s26, 1
      %p238 = por %p236, %p237
      %p240 = scmp.ne.s32.totalorder %s225, %s239
      %p241 = scmp.eq.s32.totalorder %s26, 0
      %p242 = por %p240, %p241
      %s244 = sadd.s32 %s243, 1
      %p247 = scmp.eq.s32.totalorder %s20, 1
      %p248 = scmp.ne.s32.totalorder %s243, %s245
      %p249 = scmp.eq.s32.totalorder %s20, 0
      %p250 = por %p248, %p249
      %p251 = scmp.ne.s32.totalorder %s243, %s245
      %p252 = scmp.eq.s32.totalorder %s25, 1
      %p253 = por %p251, %p252
      %p254 = scmp.ne.s32.totalorder %s245, %s246
      %p255 = scmp.eq.s32.totalorder %s25, 0
      %p256 = por %p254, %p255
      %p257 = scmp.ne.s32.totalorder %s245, %s246
      %p258 = scmp.eq.s32.totalorder %s26, 1
      %p259 = por %p257, %p258
      %p261 = scmp.ne.s32.totalorder %s246, %s260
      %p262 = scmp.eq.s32.totalorder %s26, 0
      %p263 = por %p261, %p262
      %s264 = ssub.s32 %s20, %s27
      %p265 = scmp.eq.s32.totalorder %s264, 0
      %s267 = sadd.s32 %s266, 1
      %s268 = scalar_select %p265, %s266, %s267
      %p271 = pneg %p265
      %p272 = scmp.eq.s32.totalorder %s20, 1
      %p273 = por %p271, %p272
      %p274 = scmp.ne.s32.totalorder %s266, %s269
      %p275 = scmp.eq.s32.totalorder %s20, 0
      %p276 = por %p274, %p275
      %p277 = scmp.ne.s32.totalorder %s266, %s269
      %p278 = scmp.eq.s32.totalorder %s25, 1
      %p279 = por %p277, %p278
      %p280 = scmp.ne.s32.totalorder %s269, %s270
      %p281 = scmp.eq.s32.totalorder %s25, 0
      %p282 = por %p280, %p281
      %p283 = scmp.ne.s32.totalorder %s269, %s270
      %p284 = scmp.eq.s32.totalorder %s26, 1
      %p285 = por %p283, %p284
      %p287 = scmp.ne.s32.totalorder %s270, %s286
      %p288 = scmp.eq.s32.totalorder %s26, 0
      %p289 = por %p287, %p288
      %p290 = scmp.le.s32.totalorder 1, %s20
      %p291 = scmp.lt.s32.totalorder %s20, 3
      %p292 = pnand %p290, %p291
      %p293 = pneg %p292
      // Predicated region
      $region9: #{tpu_custom_call.1} parent=5 // pred_check
        _
      $region10: #{tpu_custom_call.1} parent=5 // pred_check_branch
        %295 = sbr.rel (%p292) target = $region12
      $region11: #{tpu_custom_call.1} parent=5 // pred_region
        %s296 = ssub.s32 %s20, 1
        // Predicated region
        $region13: #{tpu_custom_call.1} parent=11 // pred_check
          %p297 = pneg %p67
        $region14: #{tpu_custom_call.1} parent=11 // pred_check_branch
          %299 = sbr.rel (%p297) target = $region16
        $region15: #{tpu_custom_call.1} parent=11 // pred_region
          _
        $region16: #{tpu_custom_call.1} parent=11 // pred_fallthru
          _
        // Predicated region
        $region17: #{tpu_custom_call.1} parent=11 // pred_check
          %p300 = pneg %p88
        $region18: #{tpu_custom_call.1} parent=11 // pred_check_branch
          %302 = sbr.rel (%p300) target = $region20
        $region19: #{tpu_custom_call.1} parent=11 // pred_region
          %304 = vsyncadd [#allocation3], 0
          %s306 = sshll.u32 %s2, 4
          %s307 = int_to_ptr.hbm [resolvable:$true] %s306
          %s308 = sshll.u32 [#allocation2], 4
          %s309 = int_to_ptr.vmem [resolvable:$true] %s308
          %311 = dma.hbm_to_vmem [thread:$0]  %s307, 32, %s309, [#allocation3]
        $region20: #{tpu_custom_call.1} parent=11 // pred_fallthru
          _
        // Predicated region
        $region21: #{tpu_custom_call.1} parent=11 // pred_check
          %p312 = pneg %p109
        $region22: #{tpu_custom_call.1} parent=11 // pred_check_branch
          %314 = sbr.rel (%p312) target = $region24
        $region23: #{tpu_custom_call.1} parent=11 // pred_region
          _
        $region24: #{tpu_custom_call.1} parent=11 // pred_fallthru
          _
        // Predicated region
        $region25: #{tpu_custom_call.1} parent=11 // pred_check
          %p315 = pneg %p130
        $region26: #{tpu_custom_call.1} parent=11 // pred_check_branch
          %317 = sbr.rel (%p315) target = $region28
        $region27: #{tpu_custom_call.1} parent=11 // pred_region
          %319 = vsyncadd [#allocation5], 0
          %s321 = sshll.u32 %s4, 4
          %s322 = int_to_ptr.hbm [resolvable:$true] %s321
          %s323 = sshll.u32 [#allocation4], 4
          %s324 = int_to_ptr.vmem [resolvable:$true] %s323
          %326 = dma.hbm_to_vmem [thread:$0]  %s322, 16, %s324, [#allocation5]
        $region28: #{tpu_custom_call.1} parent=11 // pred_fallthru
          _
        // Predicated region
        $region29: #{tpu_custom_call.1} parent=11 // pred_check
          %p327 = pneg %p151
        $region30: #{tpu_custom_call.1} parent=11 // pred_check_branch
          %329 = sbr.rel (%p327) target = $region32
        $region31: #{tpu_custom_call.1} parent=11 // pred_region
          _
        $region32: #{tpu_custom_call.1} parent=11 // pred_fallthru
          _
        // Predicated region
        $region33: #{tpu_custom_call.1} parent=11 // pred_check
          %p330 = pneg %p172
        $region34: #{tpu_custom_call.1} parent=11 // pred_check_branch
          %332 = sbr.rel (%p330) target = $region36
        $region35: #{tpu_custom_call.1} parent=11 // pred_region
          %334 = vsyncadd [#allocation5], 0
          %s336 = sshll.u32 %s6, 4
          %s337 = int_to_ptr.hbm [resolvable:$true] %s336
          %s338 = sshll.u32 [#allocation6], 4
          %s339 = int_to_ptr.vmem [resolvable:$true] %s338
          %341 = dma.hbm_to_vmem [thread:$0]  %s337, 16, %s339, [#allocation5]
        $region36: #{tpu_custom_call.1} parent=11 // pred_fallthru
          _
        // Predicated region
        $region37: #{tpu_custom_call.1} parent=11 // pred_check
          %p342 = pneg %p193
        $region38: #{tpu_custom_call.1} parent=11 // pred_check_branch
          %344 = sbr.rel (%p342) target = $region40
        $region39: #{tpu_custom_call.1} parent=11 // pred_region
          %346 = vsyncadd [#allocation8], 0
          %s347 = sshll.u32 %s7, 4
          %s348 = int_to_ptr.hbm [resolvable:$true] %s347
          %s349 = sshll.u32 [#allocation7], 4
          %s350 = int_to_ptr.vmem [resolvable:$true] %s349
          %355 = dma.hbm_to_vmem [thread:$0]  %s348, 2048, %s350, [#allocation8], 128, 128, 8
        $region40: #{tpu_custom_call.1} parent=11 // pred_fallthru
          _
        // Predicated region
        $region41: #{tpu_custom_call.1} parent=11 // pred_check
          %p356 = pneg %p214
        $region42: #{tpu_custom_call.1} parent=11 // pred_check_branch
          %358 = sbr.rel (%p356) target = $region44
        $region43: #{tpu_custom_call.1} parent=11 // pred_region
          %360 = vsyncadd [#allocation8], 0
          %s362 = sshll.u32 %s8, 4
          %s363 = int_to_ptr.hbm [resolvable:$true] %s362
          %s364 = sshll.u32 [#allocation9], 4
          %s365 = int_to_ptr.vmem [resolvable:$true] %s364
          %367 = dma.hbm_to_vmem [thread:$0]  %s363, 16, %s365, [#allocation8]
        $region44: #{tpu_custom_call.1} parent=11 // pred_fallthru
          _
        // Predicated region
        $region45: #{tpu_custom_call.1} parent=11 // pred_check
          %p368 = pneg %p235
        $region46: #{tpu_custom_call.1} parent=11 // pred_check_branch
          %370 = sbr.rel (%p368) target = $region48
        $region47: #{tpu_custom_call.1} parent=11 // pred_region
          _
        $region48: #{tpu_custom_call.1} parent=11 // pred_fallthru
          _
        // Predicated region
        $region49: #{tpu_custom_call.1} parent=11 // pred_check
          %p371 = pneg %p256
        $region50: #{tpu_custom_call.1} parent=11 // pred_check_branch
          %373 = sbr.rel (%p371) target = $region52
        $region51: #{tpu_custom_call.1} parent=11 // pred_region
          _
        $region52: #{tpu_custom_call.1} parent=11 // pred_fallthru
          _
      $region12: #{tpu_custom_call.1} parent=5 // pred_fallthru
        _
      %p374 = scmp.lt.s32.totalorder %s20, 2
      // Predicated region
      $region53: #{tpu_custom_call.1} parent=5 // pred_check
        %p375 = pneg %p374
      $region54: #{tpu_custom_call.1} parent=5 // pred_check_branch
        %377 = sbr.rel (%p375) target = $region56
      $region55: #{tpu_custom_call.1} parent=5 // pred_region
        // Predicated region
        $region57: #{tpu_custom_call.1} parent=55 // pred_check
          %p378 = pneg %p40
        $region58: #{tpu_custom_call.1} parent=55 // pred_check_branch
          %380 = sbr.rel (%p378) target = $region60
        $region59: #{tpu_custom_call.1} parent=55 // pred_region
          %s381 = smul.u32 2, %s20
          %s382 = ssub.s32 3, %s381
          %p383 = scmp.lt.s32.totalorder %s382, 2
          %s384 = scalar_select %p383, %s382, 2
          %s385 = smul.u32 8, %s384
          %p386 = scmp.lt.s32.totalorder %s381, 2
          %s387 = scalar_select %p386, %s381, 2
          %s388 = smul.addr %s387, 8
          %s389 = scalar_lea.vmem %s0, %s388
          %s390 = smul.u32 2, %s20
          %s391 = ssub.s32 3, %s390
          %p392 = scmp.lt.s32.totalorder %s391, 2
          %s393 = scalar_select %p392, %s391, 2
          %s394 = smul.u32 8, %s393
        $region60: #{tpu_custom_call.1} parent=55 // pred_fallthru
          _
      $region56: #{tpu_custom_call.1} parent=5 // pred_fallthru
        _
      %p395 = scmp.le.s32.totalorder 1, %s20
      %p396 = scmp.lt.s32.totalorder %s20, 3
      %p397 = pnand %p395, %p396
      %p398 = pneg %p397
      // Predicated region
      $region61: #{tpu_custom_call.1} parent=5 // pred_check
        _
      $region62: #{tpu_custom_call.1} parent=5 // pred_check_branch
        %400 = sbr.rel (%p397) target = $region64
      $region63: #{tpu_custom_call.1} parent=5 // pred_region
        %s401 = ssub.s32 %s20, 1
        // Predicated region
        $region65: #{tpu_custom_call.1} parent=63 // pred_check
          %p402 = pneg %p88
        $region66: #{tpu_custom_call.1} parent=63 // pred_check_branch
          %404 = sbr.rel (%p402) target = $region68
        $region67: #{tpu_custom_call.1} parent=63 // pred_region
          %406 = dma.done [#allocation3], 32
        $region68: #{tpu_custom_call.1} parent=63 // pred_fallthru
          _
        // Predicated region
        $region69: #{tpu_custom_call.1} parent=63 // pred_check
          %p407 = pneg %p130
        $region70: #{tpu_custom_call.1} parent=63 // pred_check_branch
          %409 = sbr.rel (%p407) target = $region72
        $region71: #{tpu_custom_call.1} parent=63 // pred_region
          %411 = dma.done [#allocation5], 16
        $region72: #{tpu_custom_call.1} parent=63 // pred_fallthru
          _
        // Predicated region
        $region73: #{tpu_custom_call.1} parent=63 // pred_check
          %p412 = pneg %p172
        $region74: #{tpu_custom_call.1} parent=63 // pred_check_branch
          %414 = sbr.rel (%p412) target = $region76
        $region75: #{tpu_custom_call.1} parent=63 // pred_region
          %416 = dma.done [#allocation5], 16
        $region76: #{tpu_custom_call.1} parent=63 // pred_fallthru
          _
        // Predicated region
        $region77: #{tpu_custom_call.1} parent=63 // pred_check
          %p417 = pneg %p193
        $region78: #{tpu_custom_call.1} parent=63 // pred_check_branch
          %419 = sbr.rel (%p417) target = $region80
        $region79: #{tpu_custom_call.1} parent=63 // pred_region
          %421 = dma.done [#allocation8], 2048
        $region80: #{tpu_custom_call.1} parent=63 // pred_fallthru
          _
        // Predicated region
        $region81: #{tpu_custom_call.1} parent=63 // pred_check
          %p422 = pneg %p214
        $region82: #{tpu_custom_call.1} parent=63 // pred_check_branch
          %424 = sbr.rel (%p422) target = $region84
        $region83: #{tpu_custom_call.1} parent=63 // pred_region
          %426 = dma.done [#allocation8], 16
        $region84: #{tpu_custom_call.1} parent=63 // pred_fallthru
          _
        %s427 = smul.u32 2, %s25
        %s428 = ssub.s32 3, %s427
        %p429 = scmp.lt.s32.totalorder %s428, 2
        %s430 = scalar_select %p429, %s428, 2
        %s431 = smul.u32 8, %s430
        %p432 = scmp.lt.s32.totalorder %s427, 2
        %s433 = scalar_select %p432, %s427, 2
        %s434 = smul.addr %s433, 8
        %s435 = scalar_lea.vmem %s0, %s434
        %p436 = pneg %p46
        %p437 = pneg %p43
        %p438 = pneg %p67
        %p439 = pneg %p64
        %p440 = pneg %p88
        %p441 = pneg %p85
        %p442 = pneg %p109
        %p443 = pneg %p106
        %p444 = pneg %p130
        %p445 = pneg %p127
        %p446 = pneg %p151
        %p447 = pneg %p148
        %p448 = pneg %p172
        %p449 = pneg %p169
        %p450 = pneg %p193
        %p451 = pneg %p190
        %p452 = pneg %p214
        %p453 = pneg %p211
        %p454 = pneg %p235
        %p455 = pneg %p232
        %p456 = pneg %p256
        %p457 = pneg %p253
        %p458 = pneg %p282
        %p459 = pneg %p279
        %s460 = sand.u32 %s269, 1
        %s461 = sand.u32 %s269, 1
        %s462 = smul.addr %s461, 16
        %s463 = scalar_lea.vmem [#allocation10], %s462
        %s464 = smul.u32 2, %s25
        %s465 = ssub.s32 3, %s464
        %p466 = scmp.lt.s32.totalorder %s465, 2
        %s467 = scalar_select %p466, %s465, 2
        %s468 = smul.u32 8, %s467
        %p469 = scmp.lt.s32.totalorder %s464, 2
        %s470 = scalar_select %p469, %s464, 2
        %s471 = smul.addr %s470, 8
        %s472 = scalar_lea.vmem %s0, %s471
        %s473 = smul.u32 2, %s25
        %s474 = ssub.s32 3, %s473
        %p475 = scmp.lt.s32.totalorder %s474, 2
        %s476 = scalar_select %p475, %s474, 2
        %s477 = smul.u32 8, %s476
        %s478 = smul.u32 2, %s25
        %s479 = ssub.s32 3, %s478
        %p480 = scmp.lt.s32.totalorder %s479, 2
        %s481 = scalar_select %p480, %s479, 2
        %s482 = smul.u32 8, %s481
        %v483 = vld [vmem:[%s472] sm:$0xff]
        %v484 = vld [vmem:[%s472 + $0x8] sm:$0xff]
        %v485 = vld [vmem:[%s1] sm:$0xff]
        %v486 = vld [vmem:[%s1 + $0x8] sm:$0xff]
        %v487 = vld [vmem:[%s1 + $0x10] sm:$0xff]
        %v488 = vld [vmem:[%s1 + $0x18] sm:$0xff]
        %v489 = vld [vmem:[#allocation2] sm:$0x3]
        %v491 = vperm.slane %v489, 0
        %v492 = vperm.slane %v489, 1
        %vm495 = vcmask 130048
        %v497 = vsel %vm495, %v483, 0
        %v500 = vsel %vm495, %v484, 0
        %502 = vmatpush.msra.mxu0 0.0
        %503 = vmatpush.msra.mxu0 0.0
        %504 = vmatpush.msra.mxu0 0.0
        %505 = vmatpush.msra.mxu0 0.0
        %506 = vmatpush.msra.mxu0 0.0
        %507 = vmatpush.msra.mxu0 0.0
        %508 = vmatpush.msra.mxu0 0.0
        %509 = vmatpush.msra.mxu0 0.0
        %510 = vmatpush.msra.mxu0 0.0
        %511 = vmatpush.msra.mxu0 0.0
        %512 = vmatpush.msra.mxu0 0.0
        %513 = vmatpush.msra.mxu0 0.0
        %514 = vmatpush.msra.mxu0 0.0
        %515 = vmatpush.msra.mxu0 0.0
        %516 = vmatpush.msra.mxu0 %v487
        %517 = vmatpush.msra.mxu0 %v485
        %518 = vmatmul.f32.gmra.mxu0 %v497
        %v519 = vpop.f32.mrf.mxu0
        %v520 = vadd.f32 %v491, %v519
        %521 = vmatmul.f32.gmra.mxu0 %v500
        %v522 = vpop.f32.mrf.mxu0
        %v523 = vadd.f32 %v491, %v522
        %524 = vdwg.mxu0
        %525 = vmatpush.msra.mxu0 0.0
        %526 = vmatpush.msra.mxu0 0.0
        %527 = vmatpush.msra.mxu0 0.0
        %528 = vmatpush.msra.mxu0 0.0
        %529 = vmatpush.msra.mxu0 0.0
        %530 = vmatpush.msra.mxu0 0.0
        %531 = vmatpush.msra.mxu0 0.0
        %532 = vmatpush.msra.mxu0 0.0
        %533 = vmatpush.msra.mxu0 0.0
        %534 = vmatpush.msra.mxu0 0.0
        %535 = vmatpush.msra.mxu0 0.0
        %536 = vmatpush.msra.mxu0 0.0
        %537 = vmatpush.msra.mxu0 0.0
        %538 = vmatpush.msra.mxu0 0.0
        %539 = vmatpush.msra.mxu0 %v488
        %540 = vmatpush.msra.mxu0 %v486
        %541 = vmatmul.f32.gmra.mxu0 %v497
        %v542 = vpop.f32.mrf.mxu0
        %v543 = vadd.f32 %v492, %v542
        %544 = vmatmul.f32.gmra.mxu0 %v500
        %v545 = vpop.f32.mrf.mxu0
        %v546 = vadd.f32 %v492, %v545
        %547 = vdwg.mxu0
        %v548 = vtanh.pop %v520
        %v549 = vtanh.pop %v543
        %v550 = vtanh.pop %v523
        %v551 = vtanh.pop %v546
        %v552 = vsub.f32 %v549, %v548
        %v553 = vsub.f32 %v551, %v550
        %v554 = vld [vmem:[%s3] sm:$0xff]
        %v555 = vld [vmem:[%s3 + $0x8] sm:$0xff]
        %v556 = vld [vmem:[#allocation4] sm:$0x1]
        %v558 = vperm.slane %v556, 0
        %560 = vmatpush.msra.mxu0 0.0
        %561 = vmatpush.msra.mxu0 0.0
        %562 = vmatpush.msra.mxu0 0.0
        %563 = vmatpush.msra.mxu0 0.0
        %564 = vmatpush.msra.mxu0 0.0
        %565 = vmatpush.msra.mxu0 0.0
        %566 = vmatpush.msra.mxu0 0.0
        %567 = vmatpush.msra.mxu0 0.0
        %568 = vmatpush.msra.mxu0 0.0
        %569 = vmatpush.msra.mxu0 0.0
        %570 = vmatpush.msra.mxu0 0.0
        %571 = vmatpush.msra.mxu0 0.0
        %572 = vmatpush.msra.mxu0 0.0
        %573 = vmatpush.msra.mxu0 0.0
        %574 = vmatpush.msra.mxu0 %v555
        %575 = vmatpush.msra.mxu0 %v554
        %576 = vmatmul.f32.gmra.mxu0 %v497
        %v577 = vpop.f32.mrf.mxu0
        %v578 = vadd.f32 %v558, %v577
        %579 = vmatmul.f32.gmra.mxu0 %v500
        %v580 = vpop.f32.mrf.mxu0
        %v581 = vadd.f32 %v558, %v580
        %582 = vdwg.mxu0
        %v583 = vtanh.pop %v578
        %v584 = vtanh.pop %v581
        %v585 = vmul.f32 %v583, %v552
        %v586 = vmul.f32 %v584, %v553
        %v587 = vadd.f32 %v548, %v585
        %v588 = vadd.f32 %v550, %v586
        %v589 = vld [vmem:[%s5] sm:$0xff]
        %v590 = vld [vmem:[%s5 + $0x8] sm:$0xff]
        %v591 = vld [vmem:[%s5 + $0x10] sm:$0xff]
        %v592 = vld [vmem:[%s5 + $0x18] sm:$0xff]
        %v593 = vld [vmem:[%s5 + $0x20] sm:$0xff]
        %v594 = vld [vmem:[%s5 + $0x28] sm:$0xff]
        %v595 = vld [vmem:[%s5 + $0x30] sm:$0xff]
        %v596 = vld [vmem:[%s5 + $0x38] sm:$0xff]
        %v597 = vld [vmem:[%s5 + $0x40] sm:$0xff]
        %v598 = vld [vmem:[%s5 + $0x48] sm:$0xff]
        %v599 = vld [vmem:[%s5 + $0x50] sm:$0xff]
        %v600 = vld [vmem:[%s5 + $0x58] sm:$0xff]
        %v601 = vld [vmem:[%s5 + $0x60] sm:$0xff]
        %v602 = vld [vmem:[%s5 + $0x68] sm:$0xff]
        %v603 = vld [vmem:[%s5 + $0x70] sm:$0xff]
        %v604 = vld [vmem:[%s5 + $0x78] sm:$0xff]
        %v605 = vld [vmem:[#allocation6] sm:$0x1]
        %v607 = vperm.slane %v605, 0
        %609 = vmatpush.msra.mxu0 %v604
        %610 = vmatpush.msra.mxu0 %v603
        %611 = vmatpush.msra.mxu0 %v602
        %612 = vmatpush.msra.mxu0 %v601
        %613 = vmatpush.msra.mxu0 %v600
        %614 = vmatpush.msra.mxu0 %v599
        %615 = vmatpush.msra.mxu0 %v598
        %616 = vmatpush.msra.mxu0 %v597
        %617 = vmatpush.msra.mxu0 %v596
        %618 = vmatpush.msra.mxu0 %v595
        %619 = vmatpush.msra.mxu0 %v594
        %620 = vmatpush.msra.mxu0 %v593
        %621 = vmatpush.msra.mxu0 %v592
        %622 = vmatpush.msra.mxu0 %v591
        %623 = vmatpush.msra.mxu0 %v590
        %624 = vmatpush.msra.mxu0 %v589
        %625 = vmatmul.f32.gmra.mxu0 %v587
        %v626 = vpop.f32.mrf.mxu0
        %v627 = vadd.f32 %v607, %v626
        %628 = vmatmul.f32.gmra.mxu0 %v588
        %v629 = vpop.f32.mrf.mxu0
        %v630 = vadd.f32 %v607, %v629
        %631 = vdwg.mxu0
        %v632 = vtanh.pop %v627
        %v633 = vtanh.pop %v630
        %v634 = vmul.f32 %v632, %v552
        %v635 = vmul.f32 %v633, %v553
        %v636 = vadd.f32 %v548, %v634
        %v637 = vadd.f32 %v550, %v635
        %v638 = vld [vmem:[#allocation7] sm:$0xff]
        %v639 = vld [vmem:[#allocation7 + $0x8] sm:$0xff]
        %v640 = vld [vmem:[#allocation7 + $0x10] sm:$0xff]
        %v641 = vld [vmem:[#allocation7 + $0x18] sm:$0xff]
        %v642 = vld [vmem:[#allocation7 + $0x20] sm:$0xff]
        %v643 = vld [vmem:[#allocation7 + $0x28] sm:$0xff]
        %v644 = vld [vmem:[#allocation7 + $0x30] sm:$0xff]
        %v645 = vld [vmem:[#allocation7 + $0x38] sm:$0xff]
        %v646 = vld [vmem:[#allocation7 + $0x40] sm:$0xff]
        %v647 = vld [vmem:[#allocation7 + $0x48] sm:$0xff]
        %v648 = vld [vmem:[#allocation7 + $0x50] sm:$0xff]
        %v649 = vld [vmem:[#allocation7 + $0x58] sm:$0xff]
        %v650 = vld [vmem:[#allocation7 + $0x60] sm:$0xff]
        %v651 = vld [vmem:[#allocation7 + $0x68] sm:$0xff]
        %v652 = vld [vmem:[#allocation7 + $0x70] sm:$0xff]
        %v653 = vld [vmem:[#allocation7 + $0x78] sm:$0xff]
        %v654 = vld [vmem:[#allocation9] sm:$0x1]
        %v656 = vperm.slane %v654, 0
        %658 = vmatpush.msra.mxu0 %v653
        %659 = vmatpush.msra.mxu0 %v652
        %660 = vmatpush.msra.mxu0 %v651
        %661 = vmatpush.msra.mxu0 %v650
        %662 = vmatpush.msra.mxu0 %v649
        %663 = vmatpush.msra.mxu0 %v648
        %664 = vmatpush.msra.mxu0 %v647
        %665 = vmatpush.msra.mxu0 %v646
        %666 = vmatpush.msra.mxu0 %v645
        %667 = vmatpush.msra.mxu0 %v644
        %668 = vmatpush.msra.mxu0 %v643
        %669 = vmatpush.msra.mxu0 %v642
        %670 = vmatpush.msra.mxu0 %v641
        %671 = vmatpush.msra.mxu0 %v640
        %672 = vmatpush.msra.mxu0 %v639
        %673 = vmatpush.msra.mxu0 %v638
        %674 = vmatmul.f32.gmra.mxu0 %v636
        %v675 = vpop.f32.mrf.mxu0
        %v676 = vadd.f32 %v656, %v675
        %677 = vmatmul.f32.gmra.mxu0 %v637
        %v678 = vpop.f32.mrf.mxu0
        %v679 = vadd.f32 %v656, %v678
        %680 = vdwg.mxu0
        %v681 = vtanh.pop %v676
        %v682 = vtanh.pop %v679
        %v683 = vmul.f32 %v681, %v552
        %v684 = vmul.f32 %v682, %v553
        %v685 = vadd.f32 %v548, %v683
        %v686 = vadd.f32 %v550, %v684
        %v687 = vld [vmem:[%s9] sm:$0xff]
        %v688 = vld [vmem:[%s9 + $0x8] sm:$0xff]
        %v689 = vld [vmem:[%s9 + $0x10] sm:$0xff]
        %v690 = vld [vmem:[%s9 + $0x18] sm:$0xff]
        %v691 = vld [vmem:[%s9 + $0x20] sm:$0xff]
        %v692 = vld [vmem:[%s9 + $0x28] sm:$0xff]
        %v693 = vld [vmem:[%s9 + $0x30] sm:$0xff]
        %v694 = vld [vmem:[%s9 + $0x38] sm:$0xff]
        %v695 = vld [vmem:[%s9 + $0x40] sm:$0xff]
        %v696 = vld [vmem:[%s9 + $0x48] sm:$0xff]
        %v697 = vld [vmem:[%s9 + $0x50] sm:$0xff]
        %v698 = vld [vmem:[%s9 + $0x58] sm:$0xff]
        %v699 = vld [vmem:[%s9 + $0x60] sm:$0xff]
        %v700 = vld [vmem:[%s9 + $0x68] sm:$0xff]
        %v701 = vld [vmem:[%s9 + $0x70] sm:$0xff]
        %v702 = vld [vmem:[%s9 + $0x78] sm:$0xff]
        %v703 = vld [vmem:[%s10] sm:$0x1]
        %v705 = vperm.slane %v703, 0
        %707 = vmatpush.msra.mxu0 %v702
        %708 = vmatpush.msra.mxu0 %v701
        %709 = vmatpush.msra.mxu0 %v700
        %710 = vmatpush.msra.mxu0 %v699
        %711 = vmatpush.msra.mxu0 %v698
        %712 = vmatpush.msra.mxu0 %v697
        %713 = vmatpush.msra.mxu0 %v696
        %714 = vmatpush.msra.mxu0 %v695
        %715 = vmatpush.msra.mxu0 %v694
        %716 = vmatpush.msra.mxu0 %v693
        %717 = vmatpush.msra.mxu0 %v692
        %718 = vmatpush.msra.mxu0 %v691
        %719 = vmatpush.msra.mxu0 %v690
        %720 = vmatpush.msra.mxu0 %v689
        %721 = vmatpush.msra.mxu0 %v688
        %722 = vmatpush.msra.mxu0 %v687
        %723 = vmatmul.f32.gmra.mxu0 %v685
        %v724 = vpop.f32.mrf.mxu0
        %v725 = vadd.f32 %v705, %v724
        %726 = vmatmul.f32.gmra.mxu0 %v686
        %v727 = vpop.f32.mrf.mxu0
        %v728 = vadd.f32 %v705, %v727
        %729 = vdwg.mxu0
        %vm730 = vcmask 64512
        %731 = vst.msk [vmem:[%s463] sm:$0xff] %vm730, %v725
        %732 = vst.msk [vmem:[%s463 + $0x8] sm:$0xff] %vm730, %v728
        %s733 = sand.u32 %s269, 1
        %s734 = sand.u32 %s269, 1
        %s735 = smul.addr %s734, 16
        %s736 = scalar_lea.vmem [#allocation10], %s735
        // Predicated region
        $region85: #{tpu_custom_call.1} parent=63 // pred_check
          %p737 = pneg %p279
        $region86: #{tpu_custom_call.1} parent=63 // pred_check_branch
          %739 = sbr.rel (%p737) target = $region88
        $region87: #{tpu_custom_call.1} parent=63 // pred_region
          %s740 = smul.u32 2, %s25
          %s741 = ssub.s32 3, %s740
          %p742 = scmp.lt.s32.totalorder %s741, 2
          %s743 = scalar_select %p742, %s741, 2
          %s744 = smul.u32 8, %s743
          %p745 = scmp.ne.s32.totalorder 0, %s744
          %s746 = smul.addr %s740, 8
          %s747 = scalar_lea.vmem %s11, %s746
          // Predicated region
          $region89: #{tpu_custom_call.1} parent=87 // pred_check
            %p748 = pneg %p745
          $region90: #{tpu_custom_call.1} parent=87 // pred_check_branch
            %750 = sbr.rel (%p748) target = $region92
          $region91: #{tpu_custom_call.1} parent=87 // pred_region
            // Predicated region
            $region93: #{tpu_custom_call.1} parent=91 // pred_check
              _
            $region94: #{tpu_custom_call.1} parent=91 // pred_check_branch
              %752 = sbr.rel (0) target = $region96
            $region95: #{tpu_custom_call.1} parent=91 // pred_region
              // Predicated region
              $region115: #{tpu_custom_call.1} parent=95 // pred_check
                _
              $region116: #{tpu_custom_call.1} parent=95 // pred_check_branch
                %804 = sbr.rel (0) target = $region118
              $region117: #{tpu_custom_call.1} parent=95 // pred_region
                %s805 = sshrl.u32 %s743, 1
                // While loop
                $region119: #{tpu_custom_call.1} parent=117 // loop_pre_header
                  _
                $region120: #{tpu_custom_call.1} parent=117 // loop_header
                  %s807 = sphi 0, %s809
                  %p808 = scmp.ge.s32.totalorder %s807, %s805
                  %s812 = sphi 0, %s821
                  %s813 = sphi %s736, %s824
                  %s814 = sphi %s747, %s825
                $region121: #{tpu_custom_call.1} parent=117 // loop_header_branch
                  %811 = sbr.rel (%p808) target = $region125
                $region122: #{tpu_custom_call.1} parent=117 // loop_body
                  %v815 = vld [vmem:[%s813] sm:$0xff]
                  %816 = vst [vmem:[%s814] sm:$0xff] %v815
                  %v817 = vld [vmem:[%s813 + $0x8] sm:$0xff]
                  %818 = vst [vmem:[%s814 + $0x8] sm:$0xff] %v817
                  %s819 = sadd.s32 1, %s812
                  %p820 = scmp.ge.s32.totalorder %s819, %s805
                  %s821 = scalar_select %p820, 0, %s819
                  %s822 = smul.u32 %s821, 16
                  %s823 = smul.u32 %s821, 16
                  %s824 = scalar_lea.vmem %s736, %s822 [#allocation10]
                  %s825 = scalar_lea.vmem %s747, %s823
                $region123: #{tpu_custom_call.1} parent=117 // loop_footer
                  %s809 = sadd.s32 %s807, 1
                $region124: #{tpu_custom_call.1} parent=117 // loop_footer_branch
                  %806 = sbr.rel target = $region120
                $region125: #{tpu_custom_call.1} parent=117 // loop_exit
                  _
                %s826 = sshrl.u32 %s743, 1
                %s827 = sand.u32 %s743, 1
                %s828 = smul.u32 %s826, 2
                %s829 = smul.u32 8, %s828
                %s830 = scalar_lea.vmem %s736, %s829 [#allocation10]
                %s831 = smul.u32 8, %s828
                %s832 = scalar_lea.vmem %s747, %s831
                // While loop
                $region126: #{tpu_custom_call.1} parent=117 // loop_pre_header
                  _
                $region127: #{tpu_custom_call.1} parent=117 // loop_header
                  %s834 = sphi 0, %s836
                  %p835 = scmp.ge.s32.totalorder %s834, %s827
                  %s839 = sphi 0, %s846
                  %s840 = sphi %s830, %s849
                  %s841 = sphi %s832, %s850
                $region128: #{tpu_custom_call.1} parent=117 // loop_header_branch
                  %838 = sbr.rel (%p835) target = $region132
                $region129: #{tpu_custom_call.1} parent=117 // loop_body
                  %v842 = vld [vmem:[%s840] sm:$0xff]
                  %843 = vst [vmem:[%s841] sm:$0xff] %v842
                  %s844 = sadd.s32 1, %s839
                  %p845 = scmp.ge.s32.totalorder %s844, %s827
                  %s846 = scalar_select %p845, 0, %s844
                  %s847 = smul.u32 %s846, 8
                  %s848 = smul.u32 %s846, 8
                  %s849 = scalar_lea.vmem %s830, %s847 [#allocation10]
                  %s850 = scalar_lea.vmem %s832, %s848
                $region130: #{tpu_custom_call.1} parent=117 // loop_footer
                  %s836 = sadd.s32 %s834, 1
                $region131: #{tpu_custom_call.1} parent=117 // loop_footer_branch
                  %833 = sbr.rel target = $region127
                $region132: #{tpu_custom_call.1} parent=117 // loop_exit
                  _
              $region118: #{tpu_custom_call.1} parent=95 // pred_fallthru
                _
              // Predicated region
              $region133: #{tpu_custom_call.1} parent=95 // pred_check
                _
              $region134: #{tpu_custom_call.1} parent=95 // pred_check_branch
                %852 = sbr.rel target = $region136
              $region135: #{tpu_custom_call.1} parent=95 // pred_region
                _
              $region136: #{tpu_custom_call.1} parent=95 // pred_fallthru
                _
            $region96: #{tpu_custom_call.1} parent=91 // pred_fallthru
              _
            // Predicated region
            $region97: #{tpu_custom_call.1} parent=91 // pred_check
              _
            $region98: #{tpu_custom_call.1} parent=91 // pred_check_branch
              %754 = sbr.rel target = $region100
            $region99: #{tpu_custom_call.1} parent=91 // pred_region
              %s756 = ssub.s32 256, 1
              %s757 = sshrl.u32 %s743, 1
              // While loop
              $region101: #{tpu_custom_call.1} parent=99 // loop_pre_header
                _
              $region102: #{tpu_custom_call.1} parent=99 // loop_header
                %s759 = sphi 0, %s761
                %p760 = scmp.ge.s32.totalorder %s759, %s757
                %s764 = sphi 0, %s773
                %s765 = sphi %s736, %s776
                %s766 = sphi %s747, %s777
              $region103: #{tpu_custom_call.1} parent=99 // loop_header_branch
                %763 = sbr.rel (%p760) target = $region107
              $region104: #{tpu_custom_call.1} parent=99 // loop_body
                %v767 = vld [vmem:[%s765] sm:%s756]
                %768 = vst [vmem:[%s766] sm:%s756] %v767
                %v769 = vld [vmem:[%s765 + $0x8] sm:%s756]
                %770 = vst [vmem:[%s766 + $0x8] sm:%s756] %v769
                %s771 = sadd.s32 1, %s764
                %p772 = scmp.ge.s32.totalorder %s771, %s757
                %s773 = scalar_select %p772, 0, %s771
                %s774 = smul.u32 %s773, 16
                %s775 = smul.u32 %s773, 16
                %s776 = scalar_lea.vmem %s736, %s774 [#allocation10]
                %s777 = scalar_lea.vmem %s747, %s775
              $region105: #{tpu_custom_call.1} parent=99 // loop_footer
                %s761 = sadd.s32 %s759, 1
              $region106: #{tpu_custom_call.1} parent=99 // loop_footer_branch
                %758 = sbr.rel target = $region102
              $region107: #{tpu_custom_call.1} parent=99 // loop_exit
                _
              %s778 = sshrl.u32 %s743, 1
              %s779 = sand.u32 %s743, 1
              %s780 = smul.u32 %s778, 2
              %s781 = smul.u32 8, %s780
              %s782 = scalar_lea.vmem %s736, %s781 [#allocation10]
              %s783 = smul.u32 8, %s780
              %s784 = scalar_lea.vmem %s747, %s783
              // While loop
              $region108: #{tpu_custom_call.1} parent=99 // loop_pre_header
                _
              $region109: #{tpu_custom_call.1} parent=99 // loop_header
                %s786 = sphi 0, %s788
                %p787 = scmp.ge.s32.totalorder %s786, %s779
                %s791 = sphi 0, %s798
                %s792 = sphi %s782, %s801
                %s793 = sphi %s784, %s802
              $region110: #{tpu_custom_call.1} parent=99 // loop_header_branch
                %790 = sbr.rel (%p787) target = $region114
              $region111: #{tpu_custom_call.1} parent=99 // loop_body
                %v794 = vld [vmem:[%s792] sm:%s756]
                %795 = vst [vmem:[%s793] sm:%s756] %v794
                %s796 = sadd.s32 1, %s791
                %p797 = scmp.ge.s32.totalorder %s796, %s779
                %s798 = scalar_select %p797, 0, %s796
                %s799 = smul.u32 %s798, 8
                %s800 = smul.u32 %s798, 8
                %s801 = scalar_lea.vmem %s782, %s799 [#allocation10]
                %s802 = scalar_lea.vmem %s784, %s800
              $region112: #{tpu_custom_call.1} parent=99 // loop_footer
                %s788 = sadd.s32 %s786, 1
              $region113: #{tpu_custom_call.1} parent=99 // loop_footer_branch
                %785 = sbr.rel target = $region109
              $region114: #{tpu_custom_call.1} parent=99 // loop_exit
                _
            $region100: #{tpu_custom_call.1} parent=91 // pred_fallthru
              _
          $region92: #{tpu_custom_call.1} parent=87 // pred_fallthru
            _
          %853 = vnop
        $region88: #{tpu_custom_call.1} parent=63 // pred_fallthru
          _
      $region64: #{tpu_custom_call.1} parent=5 // pred_fallthru
        _
      %p854 = scmp.le.s32.totalorder 2, %s20
      // Predicated region
      $region137: #{tpu_custom_call.1} parent=5 // pred_check
        %p855 = pneg %p854
      $region138: #{tpu_custom_call.1} parent=5 // pred_check_branch
        %857 = sbr.rel (%p855) target = $region140
      $region139: #{tpu_custom_call.1} parent=5 // pred_region
        %s858 = ssub.s32 %s20, 2
        // Predicated region
        $region141: #{tpu_custom_call.1} parent=139 // pred_check
          %p859 = pneg %p285
        $region142: #{tpu_custom_call.1} parent=139 // pred_check_branch
          %861 = sbr.rel (%p859) target = $region144
        $region143: #{tpu_custom_call.1} parent=139 // pred_region
          %s862 = sand.u32 %s270, 1
          %s863 = sand.u32 %s270, 1
          %s864 = smul.addr %s863, 16
          %s865 = scalar_lea.vmem [#allocation10], %s864
        $region144: #{tpu_custom_call.1} parent=139 // pred_fallthru
          _
      $region140: #{tpu_custom_call.1} parent=5 // pred_fallthru
        _
    $region6: #{tpu_custom_call.1} parent=1 // loop_footer
      %s24 = sadd.s32 1, %s20
    $region7: #{tpu_custom_call.1} parent=1 // loop_footer_branch
      %19 = sbr.rel target = $region3
    $region8: #{tpu_custom_call.1} parent=1 // loop_exit
      _
    %866 = vsyncpa [#allocation3], 1
    %s867 = scalar_lea.sflag [#allocation3], 1
    %868 = vsyncpa %s867, 1
    %869 = vsyncpa [#allocation5], 1
    %870 = vsyncpa [#allocation8], 1

</llo_original>
